<compile_context>
chip_gen: v5e
topology: v5e:2x2
jax: 0.10.0
libtpu: 0.0.40
codegen_flags: <defaults>
</compile_context>

<pallas_src>
import jax
import jax.numpy as jnp
from jax.experimental import pallas as pl
from jax.experimental.pallas import tpu as pltpu
import numpy as np

IN_F = 32
HID_F = 64
OUT_F = 32
PAD_F = 128          # lane-dense padded width for the packed parameter slab
BIAS_ROW = 64        # spare, sublane-aligned row where pre-broadcast biases live
BATCH = 8
SEGMENT = 2          # checkpoint_sequential segments (forward numerics unaffected)
FLOAT_BYTES = 4      # dtype_memory_size_dict[torch.float]

# (kind, in_features, out_features) mirror of the nn.Sequential children
LAYERS = [
    ("linear", IN_F, HID_F), ("relu",),
    ("linear", HID_F, HID_F), ("relu",),
    ("linear", HID_F, OUT_F), ("relu",),
]


# ----------------------------- Pallas kernel ------------------------------ #
def _mlp_kernel(x_ref, p_ref, o_ref):
    """Fused 3x (Linear + bias + ReLU).

    x_ref: [B, 32] (unpadded input)
    p_ref: [3, 128, 128] packed slab; for layer i rows 0..fan_in-1 hold the
           weight (zero-padded to 128 lanes) and rows 64..71 hold the bias
           pre-broadcast to 8 batch rows.  All other entries are zero, so the
           spare lanes of every intermediate stay exactly 0 through ReLU.
    o_ref: [B, 32]
    """
    B = x_ref.shape[0]

    # Layer 0: [B,32] @ [32,128] + bias block, ReLU.  K=32 -> single MXU pass.
    h = jnp.dot(x_ref[...], p_ref[0, :IN_F, :], preferred_element_type=jnp.float32)
    h = jnp.maximum(h + p_ref[0, BIAS_ROW:BIAS_ROW + B, :], 0.0)

    # Layer 1: [B,128] @ [128,128].  Lanes 64..127 of h are 0, so the bias /
    # padding rows of the full weight tile contribute nothing.
    h = jnp.dot(h, p_ref[1], preferred_element_type=jnp.float32)
    h = jnp.maximum(h + p_ref[1, BIAS_ROW:BIAS_ROW + B, :], 0.0)

    # Layer 2: [B,128] @ [128,128]; only output lanes 0..31 are nonzero.
    h = jnp.dot(h, p_ref[2], preferred_element_type=jnp.float32)
    h = jnp.maximum(h + p_ref[2, BIAS_ROW:BIAS_ROW + B, :], 0.0)

    # Emit the true (B, 32) output directly (one masked 32-lane store).
    o_ref[...] = h[:, :OUT_F].astype(o_ref.dtype)


# ------------------------------ forward call ------------------------------- #
@jax.jit
def _pallas_forward(x, p_slab):
    return pl.pallas_call(
        _mlp_kernel,
        out_shape=jax.ShapeDtypeStruct((x.shape[0], OUT_F), x.dtype),
        in_specs=[
            pl.BlockSpec(memory_space=pltpu.MemorySpace.VMEM),  # x
            pl.BlockSpec(memory_space=pltpu.MemorySpace.VMEM),  # packed slab
        ],
        out_specs=pl.BlockSpec(memory_space=pltpu.MemorySpace.VMEM),
    )(x, p_slab)


# ------------------------- host-side bookkeeping --------------------------- #
def _checkpoint_bookkeeping(x_shape, segments):
    """Faithful reproduction of checkpoint_sequential's cache accounting for
    record_bn_cache=False (no BN layers -> cache_size is NOT zeroed)."""
    if segments <= 1:
        return 0, 0.0
    seg_size = len(LAYERS) // segments
    cache_elems = 0
    shape = tuple(x_shape)
    end = -1
    for start in range(0, seg_size * (segments - 1), seg_size):
        end = start + seg_size - 1
        cache_elems += int(np.prod(shape))            # compute_input_cache(input)
        for j in range(start, end + 1):               # shape after this segment
            if LAYERS[j][0] == "linear":
                shape = (shape[0], LAYERS[j][2])
    cache_elems += int(np.prod(shape))                # input to the final segment
    max_bn_cache_size = 0.0                           # record_bn_cache=False
    return cache_elems * FLOAT_BYTES, max_bn_cache_size


# --------------------------- one-time packing ------------------------------ #
def pack_params(params):
    """Pack the 3 (w, b) pairs into ONE [3, 128, 128] zero-padded slab.

    Weights go in rows [0:fan_in), biases (pre-broadcast to BATCH=8 rows) go
    in the spare, sublane-aligned rows [64:72).  Done once at init on the
    host (numpy) so the per-call path contains no packing dispatches."""
    w1, b1, w2, b2, w3, b3 = (np.asarray(p, np.float32) for p in params)
    P = np.zeros((3, PAD_F, PAD_F), np.float32)
    P[0, :IN_F, :HID_F] = w1
    P[1, :HID_F, :HID_F] = w2
    P[2, :HID_F, :OUT_F] = w3
    P[0, BIAS_ROW:BIAS_ROW + BATCH, :HID_F] = np.broadcast_to(b1, (BATCH, HID_F))
    P[1, BIAS_ROW:BIAS_ROW + BATCH, :HID_F] = np.broadcast_to(b2, (BATCH, HID_F))
    P[2, BIAS_ROW:BIAS_ROW + BATCH, :OUT_F] = np.broadcast_to(b3, (BATCH, OUT_F))
    # The zero-padding is load-bearing (spare lanes must stay 0 through ReLU).
    assert P[0, IN_F:BIAS_ROW].sum() == 0.0 and P[0, BIAS_ROW + BATCH:].sum() == 0.0
    return jnp.asarray(P)


class CheckpointSeqPallas:
    """Pallas counterpart of CheckpointSeq for the concrete MLP Sequential."""

    def __init__(self, params, segment=SEGMENT):
        assert 1 <= segment <= len(LAYERS)
        self.segment = segment
        self.p_slab = pack_params(params)   # one-time packing, stays on device
        self.cache_size = 0
        self.max_bn_cache_size = 0.0

    def __call__(self, x):
        assert x.shape[0] <= BATCH, "bias block packed for batch <= 8"
        out = _pallas_forward(x, self.p_slab)
        if self.segment > 1:
            self.cache_size, self.max_bn_cache_size = _checkpoint_bookkeeping(
                x.shape, self.segment)
        return out


# ------------------------------ reference ---------------------------------- #
def _reference(x, params):
    w1, b1, w2, b2, w3, b3 = params
    h = jnp.maximum(x @ w1 + b1, 0.0)
    h = jnp.maximum(h @ w2 + b2, 0.0)
    h = jnp.maximum(h @ w3 + b3, 0.0)
    return h


def init_params(key):
    """Deterministic init. PyTorch Linear stores weight as [out, in]; we
    generate that way then transpose to [in, out] for the kernel."""
    ks = jax.random.split(key, 6)

    def lin(kw, kb, fan_in, fan_out):
        bound = 1.0 / np.sqrt(fan_in)
        w_oi = jax.random.uniform(kw, (fan_out, fan_in), jnp.float32, -bound, bound)
        b = jax.random.uniform(kb, (1, fan_out), jnp.float32, -bound, bound)
        return w_oi.T, b  # -> [in, out]

    w1, b1 = lin(ks[0], ks[1], IN_F, HID_F)
    w2, b2 = lin(ks[2], ks[3], HID_F, HID_F)
    w3, b3 = lin(ks[4], ks[5], HID_F, OUT_F)
    return (w1, b1, w2, b2, w3, b3)


if __name__ == "__main__":
    key = jax.random.PRNGKey(0)
    kx, kp = jax.random.split(key)
    x = jax.random.normal(kx, (BATCH, IN_F), jnp.float32)
    params = init_params(kp)

    model = CheckpointSeqPallas(params, segment=SEGMENT)
    out = model(x)
    out = jax.block_until_ready(out)
    assert out.shape == (BATCH, OUT_F)

    # Forward numerics must match the plain sequential reference.
    ref = _reference(x, params)
    np.testing.assert_allclose(np.asarray(out), np.asarray(ref), rtol=1e-5, atol=1e-5)

    # Bookkeeping: segment=2 -> (B*IN_F + B*HID_F) * 4 bytes, no BN cache.
    assert model.cache_size == (BATCH * IN_F + BATCH * HID_F) * FLOAT_BYTES, model.cache_size
    assert model.max_bn_cache_size == 0.0

    print("KERNEL_OK")
</pallas_src>

<mosaic_0001>
module attributes {stable_mosaic.version = 11 : i64} {
  func.func @_mlp_kernel(%arg0: memref<8x32xf32, #tpu.memory_space<vmem>>, %arg1: memref<3x128x128xf32, #tpu.memory_space<vmem>>, %arg2: memref<8x32xf32, #tpu.memory_space<vmem>>) attributes {dimension_semantics = [], scalar_prefetch = 0 : i64, scratch_operands = 0 : i64, tpu.core_type = #tpu.core_type<tc>} {
    %c0 = arith.constant 0 : index
    %c0_0 = arith.constant 0 : index
    %0 = vector.load %arg0[%c0, %c0_0] : memref<8x32xf32, #tpu.memory_space<vmem>>, vector<8x32xf32>
    %c0_1 = arith.constant 0 : index
    %c0_2 = arith.constant 0 : index
    %c0_3 = arith.constant 0 : index
    %1 = vector.load %arg1[%c0_1, %c0_2, %c0_3] : memref<3x128x128xf32, #tpu.memory_space<vmem>>, vector<1x32x128xf32>
    %2 = vector.shape_cast %1 : vector<1x32x128xf32> to vector<32x128xf32>
    %cst = arith.constant dense<0.000000e+00> : vector<8x128xf32>
    %3 = tpu.matmul %0, %2, %cst {dimension_numbers = #tpu.dot_dimension_numbers<[1], [0], [0], [1], [0, 0, 1, 1], [], []>} : vector<8x32xf32>, vector<32x128xf32>, vector<8x128xf32> -> vector<8x128xf32>
    %c0_4 = arith.constant 0 : index
    %c64 = arith.constant 64 : index
    %c0_5 = arith.constant 0 : index
    %4 = vector.load %arg1[%c0_4, %c64, %c0_5] : memref<3x128x128xf32, #tpu.memory_space<vmem>>, vector<1x8x128xf32>
    %5 = vector.shape_cast %4 : vector<1x8x128xf32> to vector<8x128xf32>
    %6 = arith.addf %3, %5 : vector<8x128xf32>
    %cst_6 = arith.constant 0.000000e+00 : f32
    %7 = vector.broadcast %cst_6 : f32 to vector<8x128xf32>
    %8 = arith.maximumf %6, %7 : vector<8x128xf32>
    %c1 = arith.constant 1 : index
    %c0_7 = arith.constant 0 : index
    %c0_8 = arith.constant 0 : index
    %9 = vector.load %arg1[%c1, %c0_7, %c0_8] : memref<3x128x128xf32, #tpu.memory_space<vmem>>, vector<1x128x128xf32>
    %10 = vector.shape_cast %9 : vector<1x128x128xf32> to vector<128x128xf32>
    %cst_9 = arith.constant dense<0.000000e+00> : vector<8x128xf32>
    %11 = tpu.matmul %8, %10, %cst_9 {dimension_numbers = #tpu.dot_dimension_numbers<[1], [0], [0], [1], [0, 0, 1, 1], [], []>} : vector<8x128xf32>, vector<128x128xf32>, vector<8x128xf32> -> vector<8x128xf32>
    %c1_10 = arith.constant 1 : index
    %c64_11 = arith.constant 64 : index
    %c0_12 = arith.constant 0 : index
    %12 = vector.load %arg1[%c1_10, %c64_11, %c0_12] : memref<3x128x128xf32, #tpu.memory_space<vmem>>, vector<1x8x128xf32>
    %13 = vector.shape_cast %12 : vector<1x8x128xf32> to vector<8x128xf32>
    %14 = arith.addf %11, %13 : vector<8x128xf32>
    %cst_13 = arith.constant 0.000000e+00 : f32
    %15 = vector.broadcast %cst_13 : f32 to vector<8x128xf32>
    %16 = arith.maximumf %14, %15 : vector<8x128xf32>
    %c2 = arith.constant 2 : index
    %c0_14 = arith.constant 0 : index
    %c0_15 = arith.constant 0 : index
    %17 = vector.load %arg1[%c2, %c0_14, %c0_15] : memref<3x128x128xf32, #tpu.memory_space<vmem>>, vector<1x128x128xf32>
    %18 = vector.shape_cast %17 : vector<1x128x128xf32> to vector<128x128xf32>
    %cst_16 = arith.constant dense<0.000000e+00> : vector<8x128xf32>
    %19 = tpu.matmul %16, %18, %cst_16 {dimension_numbers = #tpu.dot_dimension_numbers<[1], [0], [0], [1], [0, 0, 1, 1], [], []>} : vector<8x128xf32>, vector<128x128xf32>, vector<8x128xf32> -> vector<8x128xf32>
    %c2_17 = arith.constant 2 : index
    %c64_18 = arith.constant 64 : index
    %c0_19 = arith.constant 0 : index
    %20 = vector.load %arg1[%c2_17, %c64_18, %c0_19] : memref<3x128x128xf32, #tpu.memory_space<vmem>>, vector<1x8x128xf32>
    %21 = vector.shape_cast %20 : vector<1x8x128xf32> to vector<8x128xf32>
    %22 = arith.addf %19, %21 : vector<8x128xf32>
    %cst_20 = arith.constant 0.000000e+00 : f32
    %23 = vector.broadcast %cst_20 : f32 to vector<8x128xf32>
    %24 = arith.maximumf %22, %23 : vector<8x128xf32>
    %25 = vector.extract_strided_slice %24 {offsets = [0, 0], sizes = [8, 32], strides = [1, 1]} : vector<8x128xf32> to vector<8x32xf32>
    %c0_21 = arith.constant 0 : index
    %c0_22 = arith.constant 0 : index
    %26 = vector.load %arg2[%c0_21, %c0_22] : memref<8x32xf32, #tpu.memory_space<vmem>>, vector<8x32xf32>
    tpu.vector_store %arg2[%c0_21, %c0_22], %25 {strides = array<i32>} : memref<8x32xf32, #tpu.memory_space<vmem>>, vector<8x32xf32>,
    return
  }
}

</mosaic_0001>

<llo_original>
// kernel: _pallas_forward.1
$region0: #{_pallas_forward.1}
  #allocation0 [shape = 'u32[]', space=smem, size = 0x4, offset = 0x4, fixed_abs, tag = 'smem constant byte address 0x4 - core index']
  #allocation1 [shape = 'u32[72,128]{1,0:T(1,128)}', space=vmem, size = 0x9000, scoped, tag = 'internal scratch']
  %s0 = inlined_call_operand.hbm [shape: f32[8,32], index: 0, kind: input, shape index: {}]
  %s1 = inlined_call_operand.hbm [shape: f32[3,128,128], index: 1, kind: input, shape index: {}]
  %s2 = inlined_call_operand.hbm [shape: f32[8,32], index: 2, kind: output, shape index: {}]
  %s3 = sld [smem:[#allocation0]]
  $region26: #{_pallas_forward.1} parent=0
    _
  %s5 = ssub.s32 1, %s3
  %s6 = scalar_select 0, %s5, %s3
  $region1: #{_pallas_forward.1} parent=0
    #allocation2 [shape = 'u8[4096]{0}', space=vmem, size = 0x1000, scoped, tag = 'input window, operand 0, single buffered']
    #allocation3 [shape = 's32[1]{0}', space=sflag, size = 0x4, scoped, tag = 'scoped memory for _pallas_forward.1']
    #allocation4 [shape = 's32[1]{0}', space=sflag, size = 0x4, scoped, tag = 'scoped memory for _pallas_forward.1']
    #allocation5 [shape = 'u8[196608]{0}', space=vmem, size = 0x30000, scoped, tag = 'input window, operand 1, single buffered']
    #allocation6 [shape = 's32[1]{0}', space=sflag, size = 0x4, scoped, tag = 'scoped memory for _pallas_forward.1']
    #allocation7 [shape = 'u8[4096]{0}', space=vmem, size = 0x1000, scoped, tag = 'output window, operand 0, single buffered']
    %7 = vsyncpa [#allocation3], 0
    %8 = vsyncpa [#allocation6], 0
    %9 = vsyncpa [#allocation4], 0
    // Predicated region
    $region2: #{_pallas_forward.1} parent=1 // pred_check
      _
    $region3: #{_pallas_forward.1} parent=1 // pred_check_branch
      %11 = sbr.rel (0) target = $region5
    $region4: #{_pallas_forward.1} parent=1 // pred_region
      %13 = vsyncadd [#allocation3], 0
      %s15 = sshll.u32 %s0, 4
      %s16 = int_to_ptr.hbm [resolvable:$true] %s15
      %s17 = sshll.u32 [#allocation2], 4
      %s18 = int_to_ptr.vmem [resolvable:$true] %s17
      %20 = dma.hbm_to_vmem [thread:$0]  %s16, 128, %s18, [#allocation3]
    $region5: #{_pallas_forward.1} parent=1 // pred_fallthru
      _
    // Predicated region
    $region6: #{_pallas_forward.1} parent=1 // pred_check
      _
    $region7: #{_pallas_forward.1} parent=1 // pred_check_branch
      %22 = sbr.rel (0) target = $region9
    $region8: #{_pallas_forward.1} parent=1 // pred_region
      %24 = vsyncadd [#allocation6], 0
      %s25 = sshll.u32 %s1, 4
      %s26 = int_to_ptr.hbm [resolvable:$true] %s25
      %s27 = sshll.u32 [#allocation5], 4
      %s28 = int_to_ptr.vmem [resolvable:$true] %s27
      %33 = dma.hbm_to_vmem [thread:$0]  %s26, 6144, %s28, [#allocation6], 128, 128, 8
    $region9: #{_pallas_forward.1} parent=1 // pred_fallthru
      _
    // Predicated region
    $region10: #{_pallas_forward.1} parent=1 // pred_check
      _
    $region11: #{_pallas_forward.1} parent=1 // pred_check_branch
      %35 = sbr.rel (0) target = $region13
    $region12: #{_pallas_forward.1} parent=1 // pred_region
      %37 = dma.done [#allocation3], 128
    $region13: #{_pallas_forward.1} parent=1 // pred_fallthru
      _
    // Predicated region
    $region14: #{_pallas_forward.1} parent=1 // pred_check
      _
    $region15: #{_pallas_forward.1} parent=1 // pred_check_branch
      %39 = sbr.rel (0) target = $region17
    $region16: #{_pallas_forward.1} parent=1 // pred_region
      %41 = dma.done [#allocation6], 6144
    $region17: #{_pallas_forward.1} parent=1 // pred_fallthru
      _
    %v42 = vld [vmem:[#allocation2] sm:$0xff]
    %v43 = vld [vmem:[#allocation5] sm:$0xff]
    %v44 = vld [vmem:[#allocation5 + $0x8] sm:$0xff]
    %v45 = vld [vmem:[#allocation5 + $0x10] sm:$0xff]
    %v46 = vld [vmem:[#allocation5 + $0x18] sm:$0xff]
    %v47 = vld [vmem:[#allocation5 + $0x40] sm:$0xff]
    %vm48 = vcmask 261120
    %v50 = vsel %vm48, %v42, 0
    %52 = vmatpush.msra.mxu0 0.0
    %53 = vmatpush.msra.mxu0 0.0
    %54 = vmatpush.msra.mxu0 0.0
    %55 = vmatpush.msra.mxu0 0.0
    %56 = vmatpush.msra.mxu0 0.0
    %57 = vmatpush.msra.mxu0 0.0
    %58 = vmatpush.msra.mxu0 0.0
    %59 = vmatpush.msra.mxu0 0.0
    %60 = vmatpush.msra.mxu0 0.0
    %61 = vmatpush.msra.mxu0 0.0
    %62 = vmatpush.msra.mxu0 0.0
    %63 = vmatpush.msra.mxu0 0.0
    %64 = vmatpush.msra.mxu0 %v46
    %65 = vmatpush.msra.mxu0 %v45
    %66 = vmatpush.msra.mxu0 %v44
    %67 = vmatpush.msra.mxu0 %v43
    %68 = vmatmul.f32.gmra.mxu0 %v50
    %v69 = vpop.f32.mrf.mxu0
    %v70 = vadd.f32 %v47, %v69
    %71 = vdwg.mxu0
    %v72 = vmax.f32 %v70, 0.0
    %s73 = scalar_lea.vmem [#allocation5], 128
    %v74 = vld [vmem:[%s73] sm:$0xff]
    %v75 = vld [vmem:[%s73 + $0x8] sm:$0xff]
    %v76 = vld [vmem:[%s73 + $0x10] sm:$0xff]
    %v77 = vld [vmem:[%s73 + $0x18] sm:$0xff]
    %v78 = vld [vmem:[%s73 + $0x20] sm:$0xff]
    %v79 = vld [vmem:[%s73 + $0x28] sm:$0xff]
    %v80 = vld [vmem:[%s73 + $0x30] sm:$0xff]
    %v81 = vld [vmem:[%s73 + $0x38] sm:$0xff]
    %v82 = vld [vmem:[%s73 + $0x40] sm:$0xff]
    %v83 = vld [vmem:[%s73 + $0x48] sm:$0xff]
    %v84 = vld [vmem:[%s73 + $0x50] sm:$0xff]
    %v85 = vld [vmem:[%s73 + $0x58] sm:$0xff]
    %v86 = vld [vmem:[%s73 + $0x60] sm:$0xff]
    %v87 = vld [vmem:[%s73 + $0x68] sm:$0xff]
    %v88 = vld [vmem:[%s73 + $0x70] sm:$0xff]
    %v89 = vld [vmem:[%s73 + $0x78] sm:$0xff]
    %90 = vmatpush.msra.mxu0 %v89
    %91 = vmatpush.msra.mxu0 %v88
    %92 = vmatpush.msra.mxu0 %v87
    %93 = vmatpush.msra.mxu0 %v86
    %94 = vmatpush.msra.mxu0 %v85
    %95 = vmatpush.msra.mxu0 %v84
    %96 = vmatpush.msra.mxu0 %v83
    %97 = vmatpush.msra.mxu0 %v82
    %98 = vmatpush.msra.mxu0 %v81
    %99 = vmatpush.msra.mxu0 %v80
    %100 = vmatpush.msra.mxu0 %v79
    %101 = vmatpush.msra.mxu0 %v78
    %102 = vmatpush.msra.mxu0 %v77
    %103 = vmatpush.msra.mxu0 %v76
    %104 = vmatpush.msra.mxu0 %v75
    %105 = vmatpush.msra.mxu0 %v74
    %106 = vmatmul.f32.gmra.mxu0 %v72
    %v107 = vpop.f32.mrf.mxu0
    %v108 = vadd.f32 %v82, %v107
    %109 = vdwg.mxu0
    %v110 = vmax.f32 %v108, 0.0
    %s111 = scalar_lea.vmem [#allocation5], 256
    %v112 = vld [vmem:[%s111] sm:$0xff]
    %v113 = vld [vmem:[%s111 + $0x8] sm:$0xff]
    %v114 = vld [vmem:[%s111 + $0x10] sm:$0xff]
    %v115 = vld [vmem:[%s111 + $0x18] sm:$0xff]
    %v116 = vld [vmem:[%s111 + $0x20] sm:$0xff]
    %v117 = vld [vmem:[%s111 + $0x28] sm:$0xff]
    %v118 = vld [vmem:[%s111 + $0x30] sm:$0xff]
    %v119 = vld [vmem:[%s111 + $0x38] sm:$0xff]
    %v120 = vld [vmem:[%s111 + $0x40] sm:$0xff]
    %v121 = vld [vmem:[%s111 + $0x48] sm:$0xff]
    %v122 = vld [vmem:[%s111 + $0x50] sm:$0xff]
    %v123 = vld [vmem:[%s111 + $0x58] sm:$0xff]
    %v124 = vld [vmem:[%s111 + $0x60] sm:$0xff]
    %v125 = vld [vmem:[%s111 + $0x68] sm:$0xff]
    %v126 = vld [vmem:[%s111 + $0x70] sm:$0xff]
    %v127 = vld [vmem:[%s111 + $0x78] sm:$0xff]
    %128 = vmatpush.msra.mxu0 %v127
    %129 = vmatpush.msra.mxu0 %v126
    %130 = vmatpush.msra.mxu0 %v125
    %131 = vmatpush.msra.mxu0 %v124
    %132 = vmatpush.msra.mxu0 %v123
    %133 = vmatpush.msra.mxu0 %v122
    %134 = vmatpush.msra.mxu0 %v121
    %135 = vmatpush.msra.mxu0 %v120
    %136 = vmatpush.msra.mxu0 %v119
    %137 = vmatpush.msra.mxu0 %v118
    %138 = vmatpush.msra.mxu0 %v117
    %139 = vmatpush.msra.mxu0 %v116
    %140 = vmatpush.msra.mxu0 %v115
    %141 = vmatpush.msra.mxu0 %v114
    %142 = vmatpush.msra.mxu0 %v113
    %143 = vmatpush.msra.mxu0 %v112
    %144 = vmatmul.f32.gmra.mxu0 %v110
    %v145 = vpop.f32.mrf.mxu0
    %v146 = vadd.f32 %v120, %v145
    %147 = vdwg.mxu0
    %v148 = vmax.f32 %v146, 0.0
    %149 = vst.msk [vmem:[#allocation7] sm:$0xff] %vm48, %v148
    // Predicated region
    $region18: #{_pallas_forward.1} parent=1 // pred_check
      _
    $region19: #{_pallas_forward.1} parent=1 // pred_check_branch
      %151 = sbr.rel (0) target = $region21
    $region20: #{_pallas_forward.1} parent=1 // pred_region
      %153 = vsyncadd [#allocation4], 0
      %s155 = sshll.u32 [#allocation7], 4
      %s156 = int_to_ptr.vmem [resolvable:$true] %s155
      %s157 = sshll.u32 %s2, 4
      %s158 = int_to_ptr.hbm [resolvable:$true] %s157
      %160 = dma.vmem_to_hbm [thread:$0]  %s156, 128, %s158, [#allocation4]
    $region21: #{_pallas_forward.1} parent=1 // pred_fallthru
      _
    // Predicated region
    $region22: #{_pallas_forward.1} parent=1 // pred_check
      _
    $region23: #{_pallas_forward.1} parent=1 // pred_check_branch
      %162 = sbr.rel (0) target = $region25
    $region24: #{_pallas_forward.1} parent=1 // pred_region
      %164 = dma.done [#allocation4], 128
    $region25: #{_pallas_forward.1} parent=1 // pred_fallthru
      _
    %165 = vsyncpa [#allocation3], 1
    %166 = vsyncpa [#allocation6], 1
    %167 = vsyncpa [#allocation4], 1

</llo_original>
